<compile_context>
chip_gen: v7x
topology: tpu7x:2x2x1
jax: 0.10.0
libtpu: 0.0.40
codegen_flags: <defaults>
</compile_context>

<pallas_src>
import jax
import jax.numpy as jnp
from jax.experimental import pallas as pl
from jax.experimental.pallas import tpu as pltpu


def _crr_kernel(gamma_ref, x_ref, w_ref, b_ref, o_ref):
    _bt, c, hw = x_ref.shape

    # Global average pool over the (unpadded) spatial axis.
    x_avg = jnp.sum(x_ref[...].astype(jnp.float32), axis=2) * (1.0 / float(hw))  # (Bt, C)

    # Fused q/k/v: single lane-dense (Bt, C) x (C, 3C) matmul + stacked bias.
    qkv = jnp.dot(x_avg.astype(w_ref.dtype), w_ref[...],
                  preferred_element_type=jnp.float32) + b_ref[...]               # (Bt, 3C)
    q = qkv[:, :c]
    k = qkv[:, c:2 * c]
    v = qkv[:, 2 * c:]

    # attn[b, i, j] = q[b, i] * k[b, j] / sqrt(C): pure-VPU broadcast outer product
    # (avoids a K=1 MXU contraction and an XLU transpose of k).
    inv_sqrt_c = 1.0 / (float(c) ** 0.5)
    s = q[:, :, None] * (k[:, None, :] * inv_sqrt_c)                             # (Bt, C, C)

    # Fused softmax + weighted sum: only one (Bt, C, C) temp (e) stays live, and the
    # normalization is exact (division / EUP reciprocal, hidden under the HBM stream).
    m = jnp.max(s, axis=-1, keepdims=True)
    e = jnp.exp(s - m)
    num = jnp.sum(e * v[:, None, :], axis=-1)                                    # (Bt, C)
    den = jnp.sum(e, axis=-1)                                                    # (Bt, C)
    out = num / den

    corr = (gamma_ref[0] * out)[:, :, None]                                      # (Bt, C, 1)

    # Residual add in the input dtype (no full-tile f32 round trip for bf16 x).
    o_ref[...] = x_ref[...] + corr.astype(o_ref.dtype)


def channel_relation_reasoning(x, wq, bq, wk, bk, wv, bv, gamma):
    b, c, h, w = x.shape
    hw = h * w

    # No padding: the x/out BlockSpec's last two dims equal the full array dims.
    x_flat = x.reshape(b, c, hw)

    # Stack the three PyTorch Linears (y = x W^T + b) into one lane-dense (C, 3C)
    # weight and a (1, 3C) bias.  bf16 weights for large C (MXU throughput, half the
    # double-buffered weight VMEM); f32 matmul accumulation either way.
    w_dtype = jnp.bfloat16 if c >= 256 else jnp.float32
    w_all = jnp.concatenate([wq.T, wk.T, wv.T], axis=1).astype(w_dtype)
    b_all = jnp.concatenate([bq, bk, bv]).reshape(1, 3 * c).astype(jnp.float32)
    gamma = gamma.reshape(1).astype(jnp.float32)

    # ---- generation-aware VMEM budgeting --------------------------------------
    try:
        vmem_cap = int(pltpu.get_tpu_info().vmem_capacity_bytes)
    except Exception:
        vmem_cap = 64 * 1024 * 1024        # conservative default: v7x per-TC VMEM
    vmem_limit = min(vmem_cap * 3 // 4, 96 * 1024 * 1024)

    itemsize = jnp.dtype(x.dtype).itemsize
    x_is_f32 = jnp.dtype(x.dtype) == jnp.dtype(jnp.float32)
    per_bt = (
        4 * c * hw * itemsize              # in + out blocks, double-buffered
        + 2 * c * c * 4                    # live (Bt, C, C) f32 attention temps
        + 4 * 3 * c * 4                    # qkv / q / k / v rows
        + (0 if x_is_f32 else c * hw * 4)  # f32 pooling temp of the tile (bf16 x)
    )
    fixed = (2 * c * 3 * c * jnp.dtype(w_dtype).itemsize   # double-buffered weights
             + 2 * 3 * c * 4                               # double-buffered bias
             + (1 << 20))                                  # scratch/regalloc slack
    budget = int(vmem_limit * 0.85) - fixed

    if budget < per_bt:
        # TODO(synk): add a spatially-tiled two-pass Pallas path for shapes where a
        # single sample's C*HW block does not fit VMEM (most relevant on v7x);
        # plain-XLA fallback keeps the op usable at any shape.
        x_avg = x_flat.astype(jnp.float32).mean(axis=2)
        qkv = x_avg @ w_all.astype(jnp.float32) + b_all
        q, k, v = qkv[:, :c], qkv[:, c:2 * c], qkv[:, 2 * c:]
        attn = jax.nn.softmax((q[:, :, None] * k[:, None, :]) / (c ** 0.5), axis=-1)
        out = jnp.einsum('bij,bj->bi', attn, v)
        y = x_flat + (gamma[0] * out)[:, :, None].astype(x.dtype)
        return y.reshape(b, c, h, w)

    bt_max = max(1, budget // per_bt)

    # ---- Bt selection: no divisor constraint, prefer an EVEN number of grid steps
    # (the "parallel" batch axis is sharded across v7x's 2 TensorCores) and, among
    # equal step counts, the most balanced split. -------------------------------
    def _steps(t):
        return -(-b // t)

    bt0 = max(1, min(b, bt_max))
    bt = bt0
    if b >= 2:
        best = None  # (steps, bt): fewest even steps, then smallest (balanced) bt
        for t in range(1, bt0 + 1):
            s = _steps(t)
            if s >= 2 and s % 2 == 0:
                if best is None or s < best[0] or (s == best[0] and t < best[1]):
                    best = (s, t)
        if best is not None:
            bt = best[1]
    grid = (_steps(bt),)   # ragged last block is fine: OOB rows masked on store

    cost = pl.CostEstimate(
        flops=int(2 * b * c * 3 * c + 6 * b * c * c + 4 * b * c * hw),
        transcendentals=int(b * c * c),
        bytes_accessed=int(2 * b * c * hw * itemsize
                           + c * 3 * c * jnp.dtype(w_dtype).itemsize + 3 * c * 4),
    )

    out = pl.pallas_call(
        _crr_kernel,
        out_shape=jax.ShapeDtypeStruct((b, c, hw), x.dtype),
        grid=grid,
        in_specs=[
            pl.BlockSpec(memory_space=pltpu.MemorySpace.SMEM),   # gamma (1,)
            pl.BlockSpec((bt, c, hw), lambda i: (i, 0, 0)),      # x chunk
            pl.BlockSpec((c, 3 * c), lambda i: (0, 0)),          # [Wq^T|Wk^T|Wv^T]
            pl.BlockSpec((1, 3 * c), lambda i: (0, 0)),          # [bq|bk|bv]
        ],
        out_specs=pl.BlockSpec((bt, c, hw), lambda i: (i, 0, 0)),
        input_output_aliases={1: 0},                             # reuse x's HBM buffer
        compiler_params=pltpu.CompilerParams(
            dimension_semantics=("parallel",),
            vmem_limit_bytes=int(vmem_limit)),
        cost_estimate=cost,
    )(gamma, x_flat, w_all, b_all)

    return out.reshape(b, c, h, w)


def reference(x, wq, bq, wk, bk, wv, bv, gamma):
    """Pure-JAX transcription of the PyTorch forward pass."""
    b, c, h, w = x.shape
    x_avg = x.reshape(b, c, -1).mean(axis=2)                 # (b, c)
    q = x_avg @ wq.T + bq
    k = x_avg @ wk.T + bk
    v = x_avg @ wv.T + bv
    attn = (q[:, :, None] * k[:, None, :]) / (c ** 0.5)      # (b, c, c)
    attn = jax.nn.softmax(attn, axis=-1)
    out = jnp.einsum('bij,bj->bi', attn, v)                  # (b, c)
    return x + gamma[0] * out[:, :, None, None]


if __name__ == "__main__":
    key = jax.random.PRNGKey(0)
    b, c, h, w = 2, 8, 16, 16
    ks = jax.random.split(key, 7)

    x = jax.random.normal(ks[0], (b, c, h, w), jnp.float32)
    wq = jax.random.normal(ks[1], (c, c), jnp.float32) * 0.3
    bq = jax.random.normal(ks[2], (c,), jnp.float32) * 0.1
    wk = jax.random.normal(ks[3], (c, c), jnp.float32) * 0.3
    bk = jax.random.normal(ks[4], (c,), jnp.float32) * 0.1
    wv = jax.random.normal(ks[5], (c, c), jnp.float32) * 0.3
    bv = jax.random.normal(ks[6], (c,), jnp.float32) * 0.1
    # Module __init__ sets gamma = zeros(1); use a nonzero value here so the
    # attention path visibly contributes to the checked output.
    gamma = jnp.array([0.5], jnp.float32)

    y = channel_relation_reasoning(x, wq, bq, wk, bk, wv, bv, gamma)
    y = jax.block_until_ready(y)

    y_ref = reference(x, wq, bq, wk, bk, wv, bv, gamma)
    assert y.shape == (b, c, h, w)
    assert jnp.allclose(y, y_ref, atol=2e-3, rtol=2e-3), "mismatch vs reference"
    print("KERNEL_OK")
</pallas_src>

<mosaic_0001>
module attributes {stable_mosaic.version = 11 : i64} {
  func.func @_crr_kernel(%arg0: i32, %arg1: memref<1xf32, #tpu.memory_space<smem>>, %arg2: memref<1x8x256xf32, #tpu.memory_space<vmem>>, %arg3: memref<8x24xf32, #tpu.memory_space<vmem>>, %arg4: memref<1x24xf32, #tpu.memory_space<vmem>>, %arg5: memref<1x8x256xf32, #tpu.memory_space<vmem>>) attributes {dimension_semantics = [#tpu.dimension_semantics<parallel>], iteration_bounds = array<i64: 2>, scalar_prefetch = 0 : i64, scratch_operands = 0 : i64, tpu.core_type = #tpu.core_type<tc>, window_params = [{transform_indices = @transform_0, window_bounds = array<i64: 1>}, {transform_indices = @transform_1, window_bounds = array<i64: 1, 8, 256>}, {pipeline_mode = #tpu.pipeline_mode<synchronous>, transform_indices = @transform_2, window_bounds = array<i64: 8, 24>}, {pipeline_mode = #tpu.pipeline_mode<synchronous>, transform_indices = @transform_3, window_bounds = array<i64: 1, 24>}, {transform_indices = @transform_4, window_bounds = array<i64: 1, 8, 256>}]} {
    %c0 = arith.constant 0 : index
    %c0_0 = arith.constant 0 : index
    %c0_1 = arith.constant 0 : index
    %0 = vector.load %arg2[%c0, %c0_0, %c0_1] : memref<1x8x256xf32, #tpu.memory_space<vmem>>, vector<1x8x256xf32>
    %cst = arith.constant dense<0.000000e+00> : vector<1x8xf32>
    %1 = vector.multi_reduction <add>, %0, %cst [2] : vector<1x8x256xf32> to vector<1x8xf32>
    %cst_2 = arith.constant 3.906250e-03 : f32
    %2 = vector.broadcast %cst_2 : f32 to vector<1x8xf32>
    %3 = arith.mulf %1, %2 : vector<1x8xf32>
    %c0_3 = arith.constant 0 : index
    %c0_4 = arith.constant 0 : index
    %4 = vector.load %arg3[%c0_3, %c0_4] : memref<8x24xf32, #tpu.memory_space<vmem>>, vector<8x24xf32>
    %cst_5 = arith.constant dense<0.000000e+00> : vector<1x24xf32>
    %5 = tpu.matmul %3, %4, %cst_5 {dimension_numbers = #tpu.dot_dimension_numbers<[1], [0], [0], [1], [0, 0, 1, 1], [], []>} : vector<1x8xf32>, vector<8x24xf32>, vector<1x24xf32> -> vector<1x24xf32>
    %c0_6 = arith.constant 0 : index
    %c0_7 = arith.constant 0 : index
    %6 = vector.load %arg4[%c0_6, %c0_7] : memref<1x24xf32, #tpu.memory_space<vmem>>, vector<1x24xf32>
    %7 = arith.addf %5, %6 : vector<1x24xf32>
    %8 = vector.extract_strided_slice %7 {offsets = [0, 0], sizes = [1, 8], strides = [1, 1]} : vector<1x24xf32> to vector<1x8xf32>
    %9 = vector.extract_strided_slice %7 {offsets = [0, 8], sizes = [1, 8], strides = [1, 1]} : vector<1x24xf32> to vector<1x8xf32>
    %10 = vector.extract_strided_slice %7 {offsets = [0, 16], sizes = [1, 8], strides = [1, 1]} : vector<1x24xf32> to vector<1x8xf32>
    %11 = vector.shape_cast %8 : vector<1x8xf32> to vector<1x8x1xf32>
    %12 = vector.shape_cast %9 : vector<1x8xf32> to vector<1x1x8xf32>
    %cst_8 = arith.constant 0.353553385 : f32
    %13 = vector.broadcast %cst_8 : f32 to vector<1x1x8xf32>
    %14 = arith.mulf %12, %13 : vector<1x1x8xf32>
    %15 = vector.broadcast %11 : vector<1x8x1xf32> to vector<1x8x8xf32>
    %16 = vector.broadcast %14 : vector<1x1x8xf32> to vector<1x8x8xf32>
    %17 = arith.mulf %15, %16 : vector<1x8x8xf32>
    %cst_9 = arith.constant dense<0xFF800000> : vector<1x8xf32>
    %18 = vector.multi_reduction <maximumf>, %17, %cst_9 [2] : vector<1x8x8xf32> to vector<1x8xf32>
    %19 = vector.shape_cast %18 : vector<1x8xf32> to vector<1x8x1xf32>
    %20 = vector.broadcast %19 : vector<1x8x1xf32> to vector<1x8x8xf32>
    %21 = arith.subf %17, %20 : vector<1x8x8xf32>
    %22 = math.exp %21 : vector<1x8x8xf32>
    %23 = vector.shape_cast %10 : vector<1x8xf32> to vector<1x1x8xf32>
    %24 = vector.broadcast %23 : vector<1x1x8xf32> to vector<1x8x8xf32>
    %25 = arith.mulf %22, %24 : vector<1x8x8xf32>
    %cst_10 = arith.constant dense<0.000000e+00> : vector<1x8xf32>
    %26 = vector.multi_reduction <add>, %25, %cst_10 [2] : vector<1x8x8xf32> to vector<1x8xf32>
    %cst_11 = arith.constant dense<0.000000e+00> : vector<1x8xf32>
    %27 = vector.multi_reduction <add>, %22, %cst_11 [2] : vector<1x8x8xf32> to vector<1x8xf32>
    %28 = arith.divf %26, %27 : vector<1x8xf32>
    %c0_12 = arith.constant 0 : index
    %29 = memref.load %arg1[%c0_12] : memref<1xf32, #tpu.memory_space<smem>>
    %30 = vector.broadcast %29 : f32 to vector<1x8xf32>
    %31 = arith.mulf %30, %28 : vector<1x8xf32>
    %32 = vector.shape_cast %31 : vector<1x8xf32> to vector<1x8x1xf32>
    %c0_13 = arith.constant 0 : index
    %c0_14 = arith.constant 0 : index
    %c0_15 = arith.constant 0 : index
    %33 = vector.load %arg2[%c0_13, %c0_14, %c0_15] : memref<1x8x256xf32, #tpu.memory_space<vmem>>, vector<1x8x256xf32>
    %34 = vector.broadcast %32 : vector<1x8x1xf32> to vector<1x8x256xf32>
    %35 = arith.addf %33, %34 : vector<1x8x256xf32>
    %c0_16 = arith.constant 0 : index
    %c0_17 = arith.constant 0 : index
    %c0_18 = arith.constant 0 : index
    %36 = vector.load %arg5[%c0_16, %c0_17, %c0_18] : memref<1x8x256xf32, #tpu.memory_space<vmem>>, vector<1x8x256xf32>
    tpu.vector_store %arg5[%c0_16, %c0_17, %c0_18], %35 {strides = array<i32>} : memref<1x8x256xf32, #tpu.memory_space<vmem>>, vector<1x8x256xf32>,
    return
  }
  func.func @transform_0(%arg0: i32) -> i32 {
    %c0_i32 = arith.constant 0 : i32
    %c0_i32_0 = arith.constant 0 : i32
    return %c0_i32 : i32
  }
  func.func @transform_1(%arg0: i32) -> (i32, i32, i32) {
    %c0_i32 = arith.constant 0 : i32
    %c0_i32_0 = arith.constant 0 : i32
    %c0_i32_1 = arith.constant 0 : i32
    return %arg0, %c0_i32, %c0_i32_0 : i32, i32, i32
  }
  func.func @transform_2(%arg0: i32) -> (i32, i32) {
    %c0_i32 = arith.constant 0 : i32
    %c0_i32_0 = arith.constant 0 : i32
    %c0_i32_1 = arith.constant 0 : i32
    return %c0_i32, %c0_i32_0 : i32, i32
  }
  func.func @transform_3(%arg0: i32) -> (i32, i32) {
    %c0_i32 = arith.constant 0 : i32
    %c0_i32_0 = arith.constant 0 : i32
    %c0_i32_1 = arith.constant 0 : i32
    return %c0_i32, %c0_i32_0 : i32, i32
  }
  func.func @transform_4(%arg0: i32) -> (i32, i32, i32) {
    %c0_i32 = arith.constant 0 : i32
    %c0_i32_0 = arith.constant 0 : i32
    %c0_i32_1 = arith.constant 0 : i32
    return %arg0, %c0_i32, %c0_i32_0 : i32, i32, i32
  }
}

</mosaic_0001>

<llo_original>
// kernel: tpu_custom_call.1
$region0: #{tpu_custom_call.1}
  #allocation0 [shape = 'u32[]', space=smem, size = 0x4, offset = 0x4, fixed_abs, tag = 'smem constant byte address 0x4 - core index']
  #allocation1 [shape = 'u32[144,128]{1,0:T(1,128)}', space=vmem, size = 0x12000, scoped, tag = 'internal scratch']
  #allocation2 [shape = 'f32[1]{0:T(128)S(6)}', space=smem, size = 0x200, scoped, tag = 'scoped memory for tpu_custom_call.1']
  %s0 = inlined_call_operand.<no memory space> [shape: f32[1], index: 0, kind: input, shape index: {}]
  %s1 = inlined_call_operand.hbm [shape: f32[2,8,256], index: 1, kind: input, shape index: {}, may-alias: {1,4}]
  %s2 = inlined_call_operand.vmem [shape: f32[8,24], index: 2, kind: input, shape index: {}]
  %s3 = inlined_call_operand.vmem [shape: f32[1,24], index: 3, kind: input, shape index: {}]
  %s4 = inlined_call_operand.hbm [shape: f32[2,8,256], index: 4, kind: output, shape index: {}, may-alias: {1,4}]
  %s5 = sld [smem:[#allocation0]]
  $region53: #{tpu_custom_call.1} parent=0
    _
  %s7 = ssub.s32 1, %s5
  %s8 = scalar_select 0, %s7, %s5
  %9 = sst [smem:[#allocation2]] %s0
  $region1: #{tpu_custom_call.1} parent=0
    #allocation3 [shape = 'u8[16384]{0}', space=vmem, size = 0x4000, scoped, tag = 'input window, operand 1']
    #allocation4 [shape = 's32[2]{0}', space=sflag, size = 0x8, scoped, tag = 'scoped memory for tpu_custom_call.1']
    #allocation5 [shape = 's32[2]{0}', space=sflag, size = 0x8, scoped, tag = 'scoped memory for tpu_custom_call.1']
    #allocation6 [shape = 'u8[16384]{0}', space=vmem, size = 0x4000, scoped, tag = 'output window, operand 0']
    %10 = vsyncpa [#allocation4], 0
    %s11 = scalar_lea.sflag [#allocation4], 1
    %12 = vsyncpa %s11, 0
    %13 = vsyncpa [#allocation5], 0
    %s14 = scalar_lea.sflag [#allocation5], 1
    %15 = vsyncpa %s14, 0
    loop: start=0, step=1, limit=4
    $region2: #{tpu_custom_call.1} parent=1 // loop_pre_header
      _
    $region3: #{tpu_custom_call.1} parent=1 // loop_header
      %s17 = sphi 0, %s21
      %p18 = scmp.ge.s32.totalorder %s17, 4
      %s25 = sphi 0, %s25
      %s27 = sphi 0, %s25
      %s28 = sphi 0, %s27
      %s42 = sphi 0, %s28
      %s48 = sphi 0, %s50
      %s51 = sphi 0, %s48
      %s52 = sphi 0, %s51
      %s68 = sphi 0, %s52
      %s72 = sphi 0, %s72
      %s74 = sphi 0, %s72
      %s75 = sphi 0, %s74
      %s89 = sphi 0, %s75
      %s93 = sphi 0, %s93
      %s95 = sphi 0, %s93
      %s96 = sphi 0, %s95
      %s110 = sphi 0, %s96
      %s116 = sphi 0, %s118
      %s119 = sphi 0, %s116
      %s120 = sphi 0, %s119
      %s136 = sphi 0, %s120
    $region4: #{tpu_custom_call.1} parent=1 // loop_header_branch
      %20 = sbr.rel (%p18) target = $region8
    $region5: #{tpu_custom_call.1} parent=1 // loop_body
      %s22 = ssub.s32 %s17, 1
      %s23 = ssub.s32 %s17, 2
      %s24 = sadd.s32 %s17, 1
      %s26 = sadd.s32 %s25, 1
      %p29 = scmp.eq.s32.totalorder %s17, 1
      %p30 = scmp.ne.s32.totalorder %s25, %s27
      %p31 = scmp.eq.s32.totalorder %s17, 0
      %p32 = por %p30, %p31
      %p33 = scmp.ne.s32.totalorder %s25, %s27
      %p34 = scmp.eq.s32.totalorder %s22, 1
      %p35 = por %p33, %p34
      %p36 = scmp.ne.s32.totalorder %s27, %s28
      %p37 = scmp.eq.s32.totalorder %s22, 0
      %p38 = por %p36, %p37
      %p39 = scmp.ne.s32.totalorder %s27, %s28
      %p40 = scmp.eq.s32.totalorder %s23, 1
      %p41 = por %p39, %p40
      %p43 = scmp.ne.s32.totalorder %s28, %s42
      %p44 = scmp.eq.s32.totalorder %s23, 0
      %p45 = por %p43, %p44
      %s46 = ssub.s32 %s17, %s24
      %p47 = scmp.eq.s32.totalorder %s46, 0
      %s49 = sadd.s32 %s48, 1
      %s50 = scalar_select %p47, %s48, %s49
      %p53 = pneg %p47
      %p54 = scmp.eq.s32.totalorder %s17, 1
      %p55 = por %p53, %p54
      %p56 = scmp.ne.s32.totalorder %s48, %s51
      %p57 = scmp.eq.s32.totalorder %s17, 0
      %p58 = por %p56, %p57
      %p59 = scmp.ne.s32.totalorder %s48, %s51
      %p60 = scmp.eq.s32.totalorder %s22, 1
      %p61 = por %p59, %p60
      %p62 = scmp.ne.s32.totalorder %s51, %s52
      %p63 = scmp.eq.s32.totalorder %s22, 0
      %p64 = por %p62, %p63
      %p65 = scmp.ne.s32.totalorder %s51, %s52
      %p66 = scmp.eq.s32.totalorder %s23, 1
      %p67 = por %p65, %p66
      %p69 = scmp.ne.s32.totalorder %s52, %s68
      %p70 = scmp.eq.s32.totalorder %s23, 0
      %p71 = por %p69, %p70
      %s73 = sadd.s32 %s72, 1
      %p76 = scmp.eq.s32.totalorder %s17, 1
      %p77 = scmp.ne.s32.totalorder %s72, %s74
      %p78 = scmp.eq.s32.totalorder %s17, 0
      %p79 = por %p77, %p78
      %p80 = scmp.ne.s32.totalorder %s72, %s74
      %p81 = scmp.eq.s32.totalorder %s22, 1
      %p82 = por %p80, %p81
      %p83 = scmp.ne.s32.totalorder %s74, %s75
      %p84 = scmp.eq.s32.totalorder %s22, 0
      %p85 = por %p83, %p84
      %p86 = scmp.ne.s32.totalorder %s74, %s75
      %p87 = scmp.eq.s32.totalorder %s23, 1
      %p88 = por %p86, %p87
      %p90 = scmp.ne.s32.totalorder %s75, %s89
      %p91 = scmp.eq.s32.totalorder %s23, 0
      %p92 = por %p90, %p91
      %s94 = sadd.s32 %s93, 1
      %p97 = scmp.eq.s32.totalorder %s17, 1
      %p98 = scmp.ne.s32.totalorder %s93, %s95
      %p99 = scmp.eq.s32.totalorder %s17, 0
      %p100 = por %p98, %p99
      %p101 = scmp.ne.s32.totalorder %s93, %s95
      %p102 = scmp.eq.s32.totalorder %s22, 1
      %p103 = por %p101, %p102
      %p104 = scmp.ne.s32.totalorder %s95, %s96
      %p105 = scmp.eq.s32.totalorder %s22, 0
      %p106 = por %p104, %p105
      %p107 = scmp.ne.s32.totalorder %s95, %s96
      %p108 = scmp.eq.s32.totalorder %s23, 1
      %p109 = por %p107, %p108
      %p111 = scmp.ne.s32.totalorder %s96, %s110
      %p112 = scmp.eq.s32.totalorder %s23, 0
      %p113 = por %p111, %p112
      %s114 = ssub.s32 %s17, %s24
      %p115 = scmp.eq.s32.totalorder %s114, 0
      %s117 = sadd.s32 %s116, 1
      %s118 = scalar_select %p115, %s116, %s117
      %p121 = pneg %p115
      %p122 = scmp.eq.s32.totalorder %s17, 1
      %p123 = por %p121, %p122
      %p124 = scmp.ne.s32.totalorder %s116, %s119
      %p125 = scmp.eq.s32.totalorder %s17, 0
      %p126 = por %p124, %p125
      %p127 = scmp.ne.s32.totalorder %s116, %s119
      %p128 = scmp.eq.s32.totalorder %s22, 1
      %p129 = por %p127, %p128
      %p130 = scmp.ne.s32.totalorder %s119, %s120
      %p131 = scmp.eq.s32.totalorder %s22, 0
      %p132 = por %p130, %p131
      %p133 = scmp.ne.s32.totalorder %s119, %s120
      %p134 = scmp.eq.s32.totalorder %s23, 1
      %p135 = por %p133, %p134
      %p137 = scmp.ne.s32.totalorder %s120, %s136
      %p138 = scmp.eq.s32.totalorder %s23, 0
      %p139 = por %p137, %p138
      %p140 = scmp.le.s32.totalorder 1, %s17
      %p141 = scmp.lt.s32.totalorder %s17, 3
      %p142 = pnand %p140, %p141
      %p143 = pneg %p142
      // Predicated region
      $region9: #{tpu_custom_call.1} parent=5 // pred_check
        _
      $region10: #{tpu_custom_call.1} parent=5 // pred_check_branch
        %145 = sbr.rel (%p142) target = $region12
      $region11: #{tpu_custom_call.1} parent=5 // pred_region
        %s146 = ssub.s32 %s17, 1
        // Predicated region
        $region13: #{tpu_custom_call.1} parent=11 // pred_check
          %p147 = pneg %p38
        $region14: #{tpu_custom_call.1} parent=11 // pred_check_branch
          %149 = sbr.rel (%p147) target = $region16
        $region15: #{tpu_custom_call.1} parent=11 // pred_region
          _
        $region16: #{tpu_custom_call.1} parent=11 // pred_fallthru
          _
        // Predicated region
        $region17: #{tpu_custom_call.1} parent=11 // pred_check
          %p150 = pneg %p85
        $region18: #{tpu_custom_call.1} parent=11 // pred_check_branch
          %152 = sbr.rel (%p150) target = $region20
        $region19: #{tpu_custom_call.1} parent=11 // pred_region
          _
        $region20: #{tpu_custom_call.1} parent=11 // pred_fallthru
          _
        // Predicated region
        $region21: #{tpu_custom_call.1} parent=11 // pred_check
          %p153 = pneg %p106
        $region22: #{tpu_custom_call.1} parent=11 // pred_check_branch
          %155 = sbr.rel (%p153) target = $region24
        $region23: #{tpu_custom_call.1} parent=11 // pred_region
          _
        $region24: #{tpu_custom_call.1} parent=11 // pred_fallthru
          _
      $region12: #{tpu_custom_call.1} parent=5 // pred_fallthru
        _
      %p156 = scmp.lt.s32.totalorder %s17, 2
      // Predicated region
      $region25: #{tpu_custom_call.1} parent=5 // pred_check
        %p157 = pneg %p156
      $region26: #{tpu_custom_call.1} parent=5 // pred_check_branch
        %159 = sbr.rel (%p157) target = $region28
      $region27: #{tpu_custom_call.1} parent=5 // pred_region
        // Predicated region
        $region29: #{tpu_custom_call.1} parent=27 // pred_check
          %p160 = pneg %p58
        $region30: #{tpu_custom_call.1} parent=27 // pred_check_branch
          %162 = sbr.rel (%p160) target = $region32
        $region31: #{tpu_custom_call.1} parent=27 // pred_region
          %s163 = sand.u32 %s48, 1
          %s164 = scalar_lea.sflag [#allocation4], %s163
          %s165 = sand.u32 %s48, 1
          %s166 = smul.addr %s165, 16
          %s167 = scalar_lea.vmem [#allocation3], %s166
          %s169 = ssub.s32 256, 256
          %170 = vsyncadd %s164, %s169
          %s171 = smul.addr %s17, 2
          %s172 = smul.addr %s171, 128
          %s173 = scalar_lea.hbm %s1, %s172
          %s175 = sshll.u32 %s167, 4
          %s176 = int_to_ptr.vmem [resolvable:$true] %s175
          %178 = dma.hbm_to_vmem [thread:$0]  %s173, 256, %s176, %s164
        $region32: #{tpu_custom_call.1} parent=27 // pred_fallthru
          _
      $region28: #{tpu_custom_call.1} parent=5 // pred_fallthru
        _
      %p179 = scmp.le.s32.totalorder 1, %s17
      %p180 = scmp.lt.s32.totalorder %s17, 3
      %p181 = pnand %p179, %p180
      %p182 = pneg %p181
      // Predicated region
      $region33: #{tpu_custom_call.1} parent=5 // pred_check
        _
      $region34: #{tpu_custom_call.1} parent=5 // pred_check_branch
        %184 = sbr.rel (%p181) target = $region36
      $region35: #{tpu_custom_call.1} parent=5 // pred_region
        %s185 = ssub.s32 %s17, 1
        %s186 = sand.u32 %s51, 1
        %s187 = scalar_lea.sflag [#allocation4], %s186
        %s188 = sand.u32 %s51, 1
        %s189 = smul.addr %s188, 16
        %s190 = scalar_lea.vmem [#allocation3], %s189
        // Predicated region
        $region37: #{tpu_custom_call.1} parent=35 // pred_check
          %p191 = pneg %p64
        $region38: #{tpu_custom_call.1} parent=35 // pred_check_branch
          %193 = sbr.rel (%p191) target = $region40
        $region39: #{tpu_custom_call.1} parent=35 // pred_region
          %194 = dma.done %s187, 256
        $region40: #{tpu_custom_call.1} parent=35 // pred_fallthru
          _
        %p195 = pneg %p38
        %p196 = pneg %p35
        %s197 = sand.u32 %s51, 1
        %s198 = scalar_lea.sflag [#allocation4], %s197
        %s199 = sand.u32 %s51, 1
        %s200 = smul.addr %s199, 16
        %s201 = scalar_lea.vmem [#allocation3], %s200
        %p202 = pneg %p64
        %p203 = pneg %p61
        %p204 = pneg %p85
        %p205 = pneg %p82
        %p206 = pneg %p106
        %p207 = pneg %p103
        %p208 = pneg %p132
        %p209 = pneg %p129
        %s210 = sand.u32 %s119, 1
        %s211 = scalar_lea.sflag [#allocation5], %s210
        %s212 = sand.u32 %s119, 1
        %s213 = smul.addr %s212, 16
        %s214 = scalar_lea.vmem [#allocation6], %s213
        %v215 = vld [vmem:[%s190] sm:$0xff]
        %v216 = vld [vmem:[%s190 + $0x8] sm:$0xff]
        %v217 = vadd.f32 %v215, %v216
        %218 = vadd.xlane.f32.xlu0 %v217
        %v219 = vpop.xlane.xlu0 %218
        %v220 = vmul.f32 %v219, 0.00390625
        %v221 = vld [vmem:[%s2] sm:$0xff]
        %v222 = vld [vmem:[%s3] sm:$0x1]
        %v224 = vlaneseq
        %v225 = vand.u32 %v224, 127
        %v226 = vlaneseq
        %v227 = vshrl.u32 %v226, 7
        %v228 = vsub.s32 %v225, %v227
        %v229 = vrot.slane %v220, %v228
        %vm230 = vcmask 64512
        %v231 = vsel %vm230, %v229, 0
        %233 = vmatprep.subr.mxu0 0.0
        %234 = vmatpush1.msra.mxu0 %v221
        %235 = vmatprep.subr.mxu0 0.0
        %236 = vmatpush1.msra.mxu0 0.0
        %237 = vmatprep.subr.mxu0 0.0
        %238 = vmatpush1.msra.mxu0 0.0
        %239 = vmatprep.subr.mxu0 0.0
        %240 = vmatpush1.msra.mxu0 0.0
        %241 = vmatprep.subr.mxu0 0.0
        %242 = vmatpush1.msra.mxu0 0.0
        %243 = vmatprep.subr.mxu0 0.0
        %244 = vmatpush1.msra.mxu0 0.0
        %245 = vmatprep.subr.mxu0 0.0
        %246 = vmatpush1.msra.mxu0 0.0
        %247 = vmatprep.subr.mxu0 0.0
        %248 = vmatpush1.msra.mxu0 0.0
        %249 = vmatprep.subr.mxu0 0.0
        %250 = vmatpush1.msra.mxu0 0.0
        %251 = vmatprep.subr.mxu0 0.0
        %252 = vmatpush1.msra.mxu0 0.0
        %253 = vmatprep.subr.mxu0 0.0
        %254 = vmatpush1.msra.mxu0 0.0
        %255 = vmatprep.subr.mxu0 0.0
        %256 = vmatpush1.msra.mxu0 0.0
        %257 = vmatprep.subr.mxu0 0.0
        %258 = vmatpush1.msra.mxu0 0.0
        %259 = vmatprep.subr.mxu0 0.0
        %260 = vmatpush1.msra.mxu0 0.0
        %261 = vmatprep.subr.mxu0 0.0
        %262 = vmatpush1.msra.mxu0 0.0
        %263 = vmatprep.subr.mxu0 0.0
        %264 = vmatpush1.msra.mxu0 0.0
        %265 = vmatprep.subr.mxu0 0.0
        %266 = vmatpush1.msra.mxu0 0.0
        %267 = vmatprep.subr.mxu0 0.0
        %268 = vmatpush1.msra.mxu0 0.0
        %269 = vmatprep.subr.mxu0 0.0
        %270 = vmatpush1.msra.mxu0 0.0
        %271 = vmatprep.subr.mxu0 0.0
        %272 = vmatpush1.msra.mxu0 0.0
        %273 = vmatprep.subr.mxu0 0.0
        %274 = vmatpush1.msra.mxu0 0.0
        %275 = vmatprep.subr.mxu0 0.0
        %276 = vmatpush1.msra.mxu0 0.0
        %277 = vmatprep.subr.mxu0 0.0
        %278 = vmatpush1.msra.mxu0 0.0
        %279 = vmatprep.subr.mxu0 0.0
        %280 = vmatpush1.msra.mxu0 0.0
        %281 = vmatprep.subr.mxu0 0.0
        %282 = vmatpush1.msra.mxu0 0.0
        %283 = vmatprep.subr.mxu0 0.0
        %284 = vmatpush1.msra.mxu0 0.0
        %285 = vmatprep.subr.mxu0 0.0
        %286 = vmatpush1.msra.mxu0 0.0
        %287 = vmatprep.subr.mxu0 0.0
        %288 = vmatpush1.msra.mxu0 0.0
        %289 = vmatprep.subr.mxu0 0.0
        %290 = vmatpush1.msra.mxu0 0.0
        %291 = vmatprep.subr.mxu0 0.0
        %292 = vmatpush1.msra.mxu0 0.0
        %293 = vmatprep.subr.mxu0 0.0
        %294 = vmatpush1.msra.mxu0 0.0
        %295 = vmatprep.subr.mxu0 0.0
        %296 = vmatpush1.msra.mxu0 0.0
        %297 = vmatprep.mubr.f32.mxu0 0.0
        %298 = vmatmul.mubr.f32.gmra.mrb[0].mxu0 %v231
        %v299 = vpop.f32.mrb[0].mxu0
        %v300 = vadd.f32 %v222, %v299
        %v301 = vpop.f32.mrb[0].mxu0
        %302 = vdwg.mxu0
        %v303 = vlaneseq
        %v304 = vshrl.u32 %v303, 7
        %v305 = vsub.s32 0, %v304
        %v306 = vrot.slane %v300, %v305
        %308 = vbcast.lane.b32.xlu0 %v306, 256
        %v309 = vpop.permute.xlu0 %308
        %v310 = vmul.f32 %v300, 0.35355338
        %v311 = vlaneseq
        %v312 = vshrl.u32 %v311, 7
        %v313 = vsub.s32 0, %v312
        %v314 = vrot.slane %v310, %v313
        %v315 = vmul.f32 %v309, %v314
        %vm316 = vcmask 130112
        %v317 = vsel %vm316, %v315, -inf
        %318 = vmax.xlane.f32.xlu0 %v317
        %v319 = vpop.xlane.xlu0 %318
        %v320 = vsub.f32 %v315, %v319
        %v321 = vmul.f32 %v320, 1.442695
        %v322 = vpow.pop %v321
        %324 = vrot.lane.b32.xlu0 %v306, 120
        %v325 = vpop.permute.xlu0 %324
        %v327 = vmul.f32 %v322, %v325
        %329 = vrot.lane.b32.xlu0 %v327, 120
        %v330 = vpop.permute.xlu0 %329
        %v332 = vsel %vm230, %v330, 0.0
        %333 = vadd.xlane.f32.xlu0 %v332
        %v334 = vpop.xlane.xlu0 %333
        %336 = vrot.lane.b32.xlu0 %v322, 120
        %v337 = vpop.permute.xlu0 %336
        %v339 = vsel %vm230, %v337, 0.0
        %340 = vadd.xlane.f32.xlu0 %v339
        %v341 = vpop.xlane.xlu0 %340
        %v342 = vrcp.pop %v341
        %v343 = vmul.f32 %v334, %v342
        %s344 = sld [smem:[#allocation2]]
        %v345 = vstv %s344
        %v346 = vmul.f32 %v345, %v343
        %v347 = vadd.f32 %v215, %v346
        %v348 = vadd.f32 %v216, %v346
        %349 = vst [vmem:[%s214] sm:$0xff] %v347
        %350 = vst [vmem:[%s214 + $0x8] sm:$0xff] %v348
        %s351 = sand.u32 %s119, 1
        %s352 = scalar_lea.sflag [#allocation5], %s351
        %s353 = sand.u32 %s119, 1
        %s354 = smul.addr %s353, 16
        %s355 = scalar_lea.vmem [#allocation6], %s354
        // Predicated region
        $region41: #{tpu_custom_call.1} parent=35 // pred_check
          %p356 = pneg %p129
        $region42: #{tpu_custom_call.1} parent=35 // pred_check_branch
          %358 = sbr.rel (%p356) target = $region44
        $region43: #{tpu_custom_call.1} parent=35 // pred_region
          %s360 = ssub.s32 256, 256
          %361 = vsyncadd %s352, %s360
          %s362 = smul.addr %s22, 2
          %s363 = smul.addr %s362, 128
          %s364 = scalar_lea.hbm %s4, %s363
          %s366 = sshll.u32 %s355, 4
          %s367 = int_to_ptr.vmem [resolvable:$true] %s366
          %369 = dma.vmem_to_hbm [thread:$0]  %s367, 256, %s364, %s352
        $region44: #{tpu_custom_call.1} parent=35 // pred_fallthru
          _
      $region36: #{tpu_custom_call.1} parent=5 // pred_fallthru
        _
      %p370 = scmp.le.s32.totalorder 2, %s17
      // Predicated region
      $region45: #{tpu_custom_call.1} parent=5 // pred_check
        %p371 = pneg %p370
      $region46: #{tpu_custom_call.1} parent=5 // pred_check_branch
        %373 = sbr.rel (%p371) target = $region48
      $region47: #{tpu_custom_call.1} parent=5 // pred_region
        %s374 = ssub.s32 %s17, 2
        // Predicated region
        $region49: #{tpu_custom_call.1} parent=47 // pred_check
          %p375 = pneg %p135
        $region50: #{tpu_custom_call.1} parent=47 // pred_check_branch
          %377 = sbr.rel (%p375) target = $region52
        $region51: #{tpu_custom_call.1} parent=47 // pred_region
          %s378 = sand.u32 %s120, 1
          %s379 = scalar_lea.sflag [#allocation5], %s378
          %s380 = sand.u32 %s120, 1
          %s381 = smul.addr %s380, 16
          %s382 = scalar_lea.vmem [#allocation6], %s381
          %383 = dma.done %s379, 256
        $region52: #{tpu_custom_call.1} parent=47 // pred_fallthru
          _
      $region48: #{tpu_custom_call.1} parent=5 // pred_fallthru
        _
    $region6: #{tpu_custom_call.1} parent=1 // loop_footer
      %s21 = sadd.s32 1, %s17
    $region7: #{tpu_custom_call.1} parent=1 // loop_footer_branch
      %16 = sbr.rel target = $region3
    $region8: #{tpu_custom_call.1} parent=1 // loop_exit
      _
    %384 = vsyncpa [#allocation4], 1
    %s385 = scalar_lea.sflag [#allocation4], 1
    %386 = vsyncpa %s385, 1
    %387 = vsyncpa [#allocation5], 1
    %s388 = scalar_lea.sflag [#allocation5], 1
    %389 = vsyncpa %s388, 1

</llo_original>
